<compile_context>
chip_gen: v6e
topology: v6e:2x2x1
jax: 0.10.0
libtpu: 0.0.40
codegen_flags: <defaults>
</compile_context>

<pallas_src>
import jax
import jax.numpy as jnp
from jax.experimental import pallas as pl
from jax.experimental.pallas import tpu as pltpu


# ---------------------------------------------------------------------------
# Kernels
# ---------------------------------------------------------------------------
def _conv_pool_kernel(x_ref, w_ref, t_ref, ymax_ref):
    """relu(x @ w + t) followed by a running max over the point-tile axis."""
    n = pl.program_id(1)
    h = jnp.dot(x_ref[0], w_ref[...], preferred_element_type=jnp.float32)   # (TN, C)
    h = jnp.maximum(h + t_ref[...], 0.0)
    tile_max = jnp.max(h, axis=0, keepdims=True)                            # (1, C)

    @pl.when(n == 0)
    def _():
        ymax_ref[0] = tile_max

    @pl.when(n > 0)
    def _():
        ymax_ref[0] = jnp.maximum(ymax_ref[0], tile_max)


def _transform_convA_kernel(x_ref, ta_ref, wa0_ref, ta0_ref, wa1_ref, ta1_ref,
                            wbt_ref, tbt_ref, out_a_ref, ymax_ref):
    """x @ T_A -> convs_A (2 layers) -> out_A ; + TNet-B encoder conv + max-pool."""
    n = pl.program_id(1)
    xt = jnp.dot(x_ref[0], ta_ref[0], preferred_element_type=jnp.float32)   # (TN, dim)
    h = jnp.dot(xt.astype(jnp.bfloat16), wa0_ref[...],
                preferred_element_type=jnp.float32)
    h = jnp.maximum(h + ta0_ref[...], 0.0)
    h = jnp.dot(h.astype(jnp.bfloat16), wa1_ref[...],
                preferred_element_type=jnp.float32)
    out_a = jnp.maximum(h + ta1_ref[...], 0.0)                              # (TN, CA)
    out_a_ref[0] = out_a.astype(out_a_ref.dtype)

    hb = jnp.dot(out_a.astype(jnp.bfloat16), wbt_ref[...],
                 preferred_element_type=jnp.float32)
    hb = jnp.maximum(hb + tbt_ref[...], 0.0)
    tile_max = jnp.max(hb, axis=0, keepdims=True)                           # (1, 64)

    @pl.when(n == 0)
    def _():
        ymax_ref[0] = tile_max

    @pl.when(n > 0)
    def _():
        ymax_ref[0] = jnp.maximum(ymax_ref[0], tile_max)


def _transform_convB_kernel(a_ref, tb_ref, wb0_ref, tb0_ref, wb1_ref, tb1_ref,
                            wb2_ref, tb2_ref, gmax_ref):
    """out_A @ T_B -> convs_B (3 layers) -> global max-pool."""
    n = pl.program_id(1)
    a = a_ref[0].astype(jnp.bfloat16)                                       # (TN, CA)
    h = jnp.dot(a, tb_ref[0], preferred_element_type=jnp.float32)
    h = jnp.dot(h.astype(jnp.bfloat16), wb0_ref[...],
                preferred_element_type=jnp.float32)
    h = jnp.maximum(h + tb0_ref[...], 0.0)
    h = jnp.dot(h.astype(jnp.bfloat16), wb1_ref[...],
                preferred_element_type=jnp.float32)
    h = jnp.maximum(h + tb1_ref[...], 0.0)
    h = jnp.dot(h.astype(jnp.bfloat16), wb2_ref[...],
                preferred_element_type=jnp.float32)
    h = jnp.maximum(h + tb2_ref[...], 0.0)                                  # (TN, CB)
    tile_max = jnp.max(h, axis=0, keepdims=True)                            # (1, CB)

    @pl.when(n == 0)
    def _():
        gmax_ref[0] = tile_max

    @pl.when(n > 0)
    def _():
        gmax_ref[0] = jnp.maximum(gmax_ref[0], tile_max)


# ---------------------------------------------------------------------------
# TNet head (tiny per-batch MLP) — plain JAX glue between kernels
# ---------------------------------------------------------------------------
def _tnet_head(ymax, p):
    """ymax: (B, 64) f32 -> (B, d, d) transform. Dropout = identity (eval)."""
    z = jnp.maximum(ymax @ p["dec_w"] + p["dec_t"], 0.0)     # Linear + folded BN + ReLU
    t = z @ p["fin_w"] + p["fin_b"]                          # final Linear -> d*d
    d = p["dim"]
    return t.reshape(ymax.shape[0], d, d)


# ---------------------------------------------------------------------------
# Wrapper
# ---------------------------------------------------------------------------
def pointnet_encoder_forward(x, params, *, point_tile=512):
    """x: (B, dim, N) (PyTorch NCW).  Returns (global_feats (B, CB), out_A (B, CA, N))."""
    B, dim, N = x.shape
    tn = point_tile if (N % point_tile == 0) else N
    n_tiles = N // tn

    x_bnc = jnp.transpose(x, (0, 2, 1)).astype(jnp.bfloat16)   # (B, N, dim)

    pA, pB = params["tnetA"], params["tnetB"]
    (wa0, ta0), (wa1, ta1) = params["convsA"]
    (wb0, tb0), (wb1, tb1), (wb2, tb2) = params["convsB"]
    cA = wa1.shape[1]
    cB = wb2.shape[1]

    cparams = pltpu.CompilerParams(dimension_semantics=("parallel", "arbitrary"))

    def const_spec(arr):
        nd = arr.ndim
        return pl.BlockSpec(arr.shape, lambda b, n, _nd=nd: (0,) * _nd)

    # ---- stage 1: TNet-A encoder conv + per-batch max-pool ------------------
    ymaxA = pl.pallas_call(
        _conv_pool_kernel,
        out_shape=jax.ShapeDtypeStruct((B, 1, 64), jnp.float32),
        grid=(B, n_tiles),
        in_specs=[
            pl.BlockSpec((1, tn, dim), lambda b, n: (b, n, 0)),
            const_spec(pA["conv_w"]), const_spec(pA["conv_t"]),
        ],
        out_specs=pl.BlockSpec((1, 1, 64), lambda b, n: (b, 0, 0)),
        compiler_params=cparams,
    )(x_bnc, pA["conv_w"], pA["conv_t"])
    T_A = _tnet_head(ymaxA[:, 0, :], pA).astype(jnp.bfloat16)    # (B, dim, dim)

    # ---- stage 2: apply T_A, convs_A, TNet-B encoder conv + max-pool --------
    out_A_bnc, ymaxB = pl.pallas_call(
        _transform_convA_kernel,
        out_shape=(jax.ShapeDtypeStruct((B, N, cA), jnp.float32),
                   jax.ShapeDtypeStruct((B, 1, 64), jnp.float32)),
        grid=(B, n_tiles),
        in_specs=[
            pl.BlockSpec((1, tn, dim), lambda b, n: (b, n, 0)),
            pl.BlockSpec((1, dim, dim), lambda b, n: (b, 0, 0)),
            const_spec(wa0), const_spec(ta0),
            const_spec(wa1), const_spec(ta1),
            const_spec(pB["conv_w"]), const_spec(pB["conv_t"]),
        ],
        out_specs=(pl.BlockSpec((1, tn, cA), lambda b, n: (b, n, 0)),
                   pl.BlockSpec((1, 1, 64), lambda b, n: (b, 0, 0))),
        compiler_params=cparams,
    )(x_bnc, T_A, wa0, ta0, wa1, ta1, pB["conv_w"], pB["conv_t"])
    T_B = _tnet_head(ymaxB[:, 0, :], pB).astype(jnp.bfloat16)    # (B, cA, cA)

    # ---- stage 3: apply T_B, convs_B, global max-pool ------------------------
    gmax = pl.pallas_call(
        _transform_convB_kernel,
        out_shape=jax.ShapeDtypeStruct((B, 1, cB), jnp.float32),
        grid=(B, n_tiles),
        in_specs=[
            pl.BlockSpec((1, tn, cA), lambda b, n: (b, n, 0)),
            pl.BlockSpec((1, cA, cA), lambda b, n: (b, 0, 0)),
            const_spec(wb0), const_spec(tb0),
            const_spec(wb1), const_spec(tb1),
            const_spec(wb2), const_spec(tb2),
        ],
        out_specs=pl.BlockSpec((1, 1, cB), lambda b, n: (b, 0, 0)),
        compiler_params=cparams,
    )(out_A_bnc, T_B, wb0, tb0, wb1, tb1, wb2, tb2)

    global_feats = gmax[:, 0, :]                              # (B, CB)
    out_A = jnp.transpose(out_A_bnc, (0, 2, 1))               # (B, CA, N) — PyTorch NCW
    return global_feats, out_A


# ---------------------------------------------------------------------------
# Synthetic parameters with BN(eval) folded (scale -> weight, shift -> bias)
# ---------------------------------------------------------------------------
def make_params(key, dim, shared_A, shared_B):
    eps = 1e-5
    kit = iter(jax.random.split(key, 64))

    def nrm(shape, scale=0.05):
        return scale * jax.random.normal(next(kit), shape, dtype=jnp.float32)

    def bn_fold(cin, cout, weight_dtype):
        w = nrm((cin, cout))                       # Conv1d(k=1)/Linear weight^T
        bias = nrm((cout,), 0.02)
        gamma = 1.0 + nrm((cout,), 0.1)
        beta = nrm((cout,), 0.05)
        rmean = nrm((cout,), 0.05)
        rvar = jnp.abs(nrm((cout,), 0.2)) + 0.5
        s = gamma / jnp.sqrt(rvar + eps)
        w_f = (w * s[None, :]).astype(weight_dtype)            # scale folded into weight
        t = ((bias - rmean) * s + beta)[None, :]                # (1, cout) f32 shift
        return w_f, t

    def conv_bn(cin, cout):
        return bn_fold(cin, cout, jnp.bfloat16)

    def tnet(d):
        cw, ct = conv_bn(d, 64)                    # encoder Conv1d(d->64)+BN
        dw, dt = bn_fold(64, 32, jnp.float32)      # decode Linear(64->32)+BN
        fw = nrm((32, d * d))                      # final Linear(32 -> d*d)
        fb = jnp.eye(d, dtype=jnp.float32).reshape(1, d * d) + nrm((1, d * d), 0.02)
        return dict(conv_w=cw, conv_t=ct, dec_w=dw, dec_t=dt, fin_w=fw, fin_b=fb, dim=d)

    return dict(
        tnetA=tnet(dim),
        tnetB=tnet(shared_A[-1]),
        convsA=[conv_bn(ci, co) for ci, co in
                zip((dim,) + tuple(shared_A[:-1]), shared_A)],
        convsB=[conv_bn(ci, co) for ci, co in
                zip((shared_A[-1],) + tuple(shared_B[:-1]), shared_B)],
    )


# ---------------------------------------------------------------------------
# Pure-JAX reference (mirrors the kernel's bf16 matmul / f32 accumulate numerics)
# ---------------------------------------------------------------------------
def reference_forward(x, params):
    xb = jnp.transpose(x, (0, 2, 1))               # (B, N, dim) f32

    def conv(h, w, t):
        y = jnp.einsum("bnc,cd->bnd", h.astype(jnp.bfloat16), w,
                       preferred_element_type=jnp.float32)
        return jnp.maximum(y + t[None], 0.0)

    pA, pB = params["tnetA"], params["tnetB"]

    yA = conv(xb, pA["conv_w"], pA["conv_t"])
    T_A = _tnet_head(jnp.max(yA, axis=1), pA).astype(jnp.bfloat16)
    h = jnp.einsum("bnc,bcd->bnd", xb.astype(jnp.bfloat16), T_A,
                   preferred_element_type=jnp.float32)
    for w, t in params["convsA"]:
        h = conv(h, w, t)
    out_A = h                                      # (B, N, CA) f32

    yB = conv(out_A, pB["conv_w"], pB["conv_t"])
    T_B = _tnet_head(jnp.max(yB, axis=1), pB).astype(jnp.bfloat16)
    hb = jnp.einsum("bnc,bcd->bnd", out_A.astype(jnp.bfloat16), T_B,
                    preferred_element_type=jnp.float32)
    for w, t in params["convsB"]:
        hb = conv(hb, w, t)
    global_feats = jnp.max(hb, axis=1)             # (B, CB)
    return global_feats, jnp.transpose(out_A, (0, 2, 1))


if __name__ == "__main__":
    # Small but forward-consistent shapes (module defaults for widths).
    B, N = 4, 256
    dim = 3
    shared_A = (64, 64)
    shared_B = (64, 128, 1024)

    key = jax.random.PRNGKey(0)
    kp, kx = jax.random.split(key)
    params = make_params(kp, dim, shared_A, shared_B)
    x = jax.random.normal(kx, (B, dim, N), dtype=jnp.float32)

    # point_tile=128 -> 2 point-tiles per batch, exercising the max-pool accumulator.
    global_feats, out_A = pointnet_encoder_forward(x, params, point_tile=128)
    jax.block_until_ready((global_feats, out_A))

    gref, aref = reference_forward(x, params)
    assert global_feats.shape == (B, shared_B[-1]), global_feats.shape
    assert out_A.shape == (B, shared_A[-1], N), out_A.shape
    assert jnp.allclose(global_feats, gref, atol=2e-3, rtol=2e-3), \
        float(jnp.max(jnp.abs(global_feats - gref)))
    assert jnp.allclose(out_A, aref, atol=2e-3, rtol=2e-3), \
        float(jnp.max(jnp.abs(out_A - aref)))

    print("KERNEL_OK")
</pallas_src>

<mosaic_0001>
module attributes {stable_mosaic.version = 11 : i64} {
  func.func @_conv_pool_kernel(%arg0: i32, %arg1: i32, %arg2: memref<1x128x3xbf16, #tpu.memory_space<vmem>>, %arg3: memref<3x64xbf16, #tpu.memory_space<vmem>>, %arg4: memref<1x64xf32, #tpu.memory_space<vmem>>, %arg5: memref<1x1x64xf32, #tpu.memory_space<vmem>>) attributes {dimension_semantics = [#tpu.dimension_semantics<parallel>, #tpu.dimension_semantics<arbitrary>], iteration_bounds = array<i64: 4, 2>, scalar_prefetch = 0 : i64, scratch_operands = 0 : i64, tpu.core_type = #tpu.core_type<tc>, window_params = [{transform_indices = @transform_0, window_bounds = array<i64: 1, 128, 3>}, {pipeline_mode = #tpu.pipeline_mode<synchronous>, transform_indices = @transform_1, window_bounds = array<i64: 3, 64>}, {pipeline_mode = #tpu.pipeline_mode<synchronous>, transform_indices = @transform_2, window_bounds = array<i64: 1, 64>}, {transform_indices = @transform_3, window_bounds = array<i64: 1, 1, 64>}]} {
    %c0 = arith.constant 0 : index
    %c0_0 = arith.constant 0 : index
    %c0_1 = arith.constant 0 : index
    %0 = vector.load %arg2[%c0, %c0_0, %c0_1] : memref<1x128x3xbf16, #tpu.memory_space<vmem>>, vector<1x128x3xbf16>
    %1 = vector.shape_cast %0 : vector<1x128x3xbf16> to vector<128x3xbf16>
    %c0_2 = arith.constant 0 : index
    %c0_3 = arith.constant 0 : index
    %2 = vector.load %arg3[%c0_2, %c0_3] : memref<3x64xbf16, #tpu.memory_space<vmem>>, vector<3x64xbf16>
    %cst = arith.constant dense<0.000000e+00> : vector<128x64xf32>
    %3 = tpu.matmul %1, %2, %cst {dimension_numbers = #tpu.dot_dimension_numbers<[1], [0], [0], [1], [0, 0, 1, 1], [], []>} : vector<128x3xbf16>, vector<3x64xbf16>, vector<128x64xf32> -> vector<128x64xf32>
    %c0_4 = arith.constant 0 : index
    %c0_5 = arith.constant 0 : index
    %4 = vector.load %arg4[%c0_4, %c0_5] : memref<1x64xf32, #tpu.memory_space<vmem>>, vector<1x64xf32>
    %5 = vector.broadcast %4 : vector<1x64xf32> to vector<128x64xf32>
    %6 = arith.addf %3, %5 : vector<128x64xf32>
    %cst_6 = arith.constant 0.000000e+00 : f32
    %7 = vector.broadcast %cst_6 : f32 to vector<128x64xf32>
    %8 = arith.maximumf %6, %7 : vector<128x64xf32>
    %cst_7 = arith.constant dense<0xFF800000> : vector<64xf32>
    %9 = vector.multi_reduction <maximumf>, %8, %cst_7 [0] : vector<128x64xf32> to vector<64xf32>
    %10 = vector.shape_cast %9 : vector<64xf32> to vector<1x64xf32>
    %c0_i32 = arith.constant 0 : i32
    %11 = arith.cmpi eq, %arg1, %c0_i32 : i32
    %12 = arith.extui %11 : i1 to i32
    %c0_i32_8 = arith.constant 0 : i32
    %13 = arith.cmpi ne, %12, %c0_i32_8 : i32
    scf.if %13 {
      %c0_11 = arith.constant 0 : index
      %c0_12 = arith.constant 0 : index
      %c0_13 = arith.constant 0 : index
      %17 = vector.load %arg5[%c0_11, %c0_12, %c0_13] : memref<1x1x64xf32, #tpu.memory_space<vmem>>, vector<1x1x64xf32>
      %18 = vector.shape_cast %17 : vector<1x1x64xf32> to vector<1x64xf32>
      %19 = vector.shape_cast %10 : vector<1x64xf32> to vector<1x1x64xf32>
      tpu.vector_store %arg5[%c0_11, %c0_12, %c0_13], %19 {strides = array<i32>} : memref<1x1x64xf32, #tpu.memory_space<vmem>>, vector<1x1x64xf32>,
    } else {
    }
    %c0_i32_9 = arith.constant 0 : i32
    %14 = arith.cmpi sgt, %arg1, %c0_i32_9 : i32
    %15 = arith.extui %14 : i1 to i32
    %c0_i32_10 = arith.constant 0 : i32
    %16 = arith.cmpi ne, %15, %c0_i32_10 : i32
    scf.if %16 {
      %c0_11 = arith.constant 0 : index
      %c0_12 = arith.constant 0 : index
      %c0_13 = arith.constant 0 : index
      %17 = vector.load %arg5[%c0_11, %c0_12, %c0_13] : memref<1x1x64xf32, #tpu.memory_space<vmem>>, vector<1x1x64xf32>
      %18 = vector.shape_cast %17 : vector<1x1x64xf32> to vector<1x64xf32>
      %19 = arith.maximumf %18, %10 : vector<1x64xf32>
      %c0_14 = arith.constant 0 : index
      %c0_15 = arith.constant 0 : index
      %c0_16 = arith.constant 0 : index
      %20 = vector.load %arg5[%c0_14, %c0_15, %c0_16] : memref<1x1x64xf32, #tpu.memory_space<vmem>>, vector<1x1x64xf32>
      %21 = vector.shape_cast %20 : vector<1x1x64xf32> to vector<1x64xf32>
      %22 = vector.shape_cast %19 : vector<1x64xf32> to vector<1x1x64xf32>
      tpu.vector_store %arg5[%c0_14, %c0_15, %c0_16], %22 {strides = array<i32>} : memref<1x1x64xf32, #tpu.memory_space<vmem>>, vector<1x1x64xf32>,
    } else {
    }
    return
  }
  func.func @transform_0(%arg0: i32, %arg1: i32) -> (i32, i32, i32) {
    %c0_i32 = arith.constant 0 : i32
    %c0_i32_0 = arith.constant 0 : i32
    return %arg0, %arg1, %c0_i32 : i32, i32, i32
  }
  func.func @transform_1(%arg0: i32, %arg1: i32) -> (i32, i32) {
    %c0_i32 = arith.constant 0 : i32
    %c0_i32_0 = arith.constant 0 : i32
    %c0_i32_1 = arith.constant 0 : i32
    return %c0_i32, %c0_i32_0 : i32, i32
  }
  func.func @transform_2(%arg0: i32, %arg1: i32) -> (i32, i32) {
    %c0_i32 = arith.constant 0 : i32
    %c0_i32_0 = arith.constant 0 : i32
    %c0_i32_1 = arith.constant 0 : i32
    return %c0_i32, %c0_i32_0 : i32, i32
  }
  func.func @transform_3(%arg0: i32, %arg1: i32) -> (i32, i32, i32) {
    %c0_i32 = arith.constant 0 : i32
    %c0_i32_0 = arith.constant 0 : i32
    %c0_i32_1 = arith.constant 0 : i32
    return %arg0, %c0_i32, %c0_i32_0 : i32, i32, i32
  }
}

</mosaic_0001>

<llo_original>
// kernel: tpu_custom_call.1
$region0: #{tpu_custom_call.1}
  #allocation0 [shape = 'u32[]', space=smem, size = 0x4, offset = 0x4, fixed_abs, tag = 'smem constant byte address 0x4 - core index']
  #allocation1 [shape = 'u32[144,128]{1,0:T(1,128)}', space=vmem, size = 0x12000, scoped, tag = 'internal scratch']
  %s0 = inlined_call_operand.vmem [shape: bf16[4,256,3], index: 0, kind: input, shape index: {}]
  %s1 = inlined_call_operand.vmem [shape: bf16[3,64], index: 1, kind: input, shape index: {}]
  %s2 = inlined_call_operand.vmem [shape: f32[1,64], index: 2, kind: input, shape index: {}]
  %s3 = inlined_call_operand.hbm [shape: f32[4,1,64], index: 3, kind: output, shape index: {}]
  %s4 = sld [smem:[#allocation0]]
  $region53: #{tpu_custom_call.1} parent=0
    _
  %s6 = ssub.s32 1, %s4
  %s7 = scalar_select 0, %s6, %s4
  $region1: #{tpu_custom_call.1} parent=0
    #allocation2 [shape = 'u8[1024]{0}', space=vmem, size = 0x400, scoped, tag = 'output window, operand 0']
    #allocation3 [shape = 's32[2]{0}', space=sflag, size = 0x8, scoped, tag = 'scoped memory for tpu_custom_call.1']
    %8 = vsyncpa [#allocation3], 0
    %s9 = scalar_lea.sflag [#allocation3], 1
    %10 = vsyncpa %s9, 0
    loop: start=0, step=1, limit=10
    $region2: #{tpu_custom_call.1} parent=1 // loop_pre_header
      _
    $region3: #{tpu_custom_call.1} parent=1 // loop_header
      %s12 = sphi 0, %s16
      %p13 = scmp.ge.s32.totalorder %s12, 10
      %s19 = sphi 0, %s31
      %s20 = sphi 0, %s27
      %s21 = sphi 0, %s19
      %s22 = sphi 0, %s20
      %s23 = sphi 0, %s21
      %s24 = sphi 0, %s22
      %s36 = sphi 0, %s38
      %s39 = sphi 0, %s36
      %s40 = sphi 0, %s39
      %s56 = sphi 0, %s40
      %s60 = sphi 0, %s60
      %s62 = sphi 0, %s60
      %s63 = sphi 0, %s62
      %s77 = sphi 0, %s63
      %s81 = sphi 0, %s81
      %s83 = sphi 0, %s81
      %s84 = sphi 0, %s83
      %s98 = sphi 0, %s84
      %s104 = sphi 0, %s106
      %s107 = sphi 0, %s104
      %s108 = sphi 0, %s107
      %s124 = sphi 0, %s108
    $region4: #{tpu_custom_call.1} parent=1 // loop_header_branch
      %15 = sbr.rel (%p13) target = $region8
    $region5: #{tpu_custom_call.1} parent=1 // loop_body
      %s17 = ssub.s32 %s12, 1
      %s18 = ssub.s32 %s12, 2
      %s25 = sadd.s32 1, %s20
      %p26 = scmp.ge.s32.totalorder %s25, 2
      %s27 = scalar_select %p26, 0, %s25
      %s28 = sadd.s32 1, %s19
      %s29 = scalar_select %p26, %s28, %s19
      %p30 = scmp.ge.s32.totalorder %s29, 4
      %s31 = scalar_select %p30, 0, %s29
      %s32 = ssub.s32 %s19, %s31
      %s33 = ssub.s32 %s20, %s27
      %s34 = sor.u32 %s32, %s33
      %p35 = scmp.eq.s32.totalorder %s34, 0
      %s37 = sadd.s32 %s36, 1
      %s38 = scalar_select %p35, %s36, %s37
      %p41 = pneg %p35
      %p42 = scmp.eq.s32.totalorder %s12, 7
      %p43 = por %p41, %p42
      %p44 = scmp.ne.s32.totalorder %s36, %s39
      %p45 = scmp.eq.s32.totalorder %s12, 0
      %p46 = por %p44, %p45
      %p47 = scmp.ne.s32.totalorder %s36, %s39
      %p48 = scmp.eq.s32.totalorder %s17, 7
      %p49 = por %p47, %p48
      %p50 = scmp.ne.s32.totalorder %s39, %s40
      %p51 = scmp.eq.s32.totalorder %s17, 0
      %p52 = por %p50, %p51
      %p53 = scmp.ne.s32.totalorder %s39, %s40
      %p54 = scmp.eq.s32.totalorder %s18, 7
      %p55 = por %p53, %p54
      %p57 = scmp.ne.s32.totalorder %s40, %s56
      %p58 = scmp.eq.s32.totalorder %s18, 0
      %p59 = por %p57, %p58
      %s61 = sadd.s32 %s60, 1
      %p64 = scmp.eq.s32.totalorder %s12, 7
      %p65 = scmp.ne.s32.totalorder %s60, %s62
      %p66 = scmp.eq.s32.totalorder %s12, 0
      %p67 = por %p65, %p66
      %p68 = scmp.ne.s32.totalorder %s60, %s62
      %p69 = scmp.eq.s32.totalorder %s17, 7
      %p70 = por %p68, %p69
      %p71 = scmp.ne.s32.totalorder %s62, %s63
      %p72 = scmp.eq.s32.totalorder %s17, 0
      %p73 = por %p71, %p72
      %p74 = scmp.ne.s32.totalorder %s62, %s63
      %p75 = scmp.eq.s32.totalorder %s18, 7
      %p76 = por %p74, %p75
      %p78 = scmp.ne.s32.totalorder %s63, %s77
      %p79 = scmp.eq.s32.totalorder %s18, 0
      %p80 = por %p78, %p79
      %s82 = sadd.s32 %s81, 1
      %p85 = scmp.eq.s32.totalorder %s12, 7
      %p86 = scmp.ne.s32.totalorder %s81, %s83
      %p87 = scmp.eq.s32.totalorder %s12, 0
      %p88 = por %p86, %p87
      %p89 = scmp.ne.s32.totalorder %s81, %s83
      %p90 = scmp.eq.s32.totalorder %s17, 7
      %p91 = por %p89, %p90
      %p92 = scmp.ne.s32.totalorder %s83, %s84
      %p93 = scmp.eq.s32.totalorder %s17, 0
      %p94 = por %p92, %p93
      %p95 = scmp.ne.s32.totalorder %s83, %s84
      %p96 = scmp.eq.s32.totalorder %s18, 7
      %p97 = por %p95, %p96
      %p99 = scmp.ne.s32.totalorder %s84, %s98
      %p100 = scmp.eq.s32.totalorder %s18, 0
      %p101 = por %p99, %p100
      %s102 = ssub.s32 %s19, %s31
      %p103 = scmp.eq.s32.totalorder %s102, 0
      %s105 = sadd.s32 %s104, 1
      %s106 = scalar_select %p103, %s104, %s105
      %p109 = pneg %p103
      %p110 = scmp.eq.s32.totalorder %s12, 7
      %p111 = por %p109, %p110
      %p112 = scmp.ne.s32.totalorder %s104, %s107
      %p113 = scmp.eq.s32.totalorder %s12, 0
      %p114 = por %p112, %p113
      %p115 = scmp.ne.s32.totalorder %s104, %s107
      %p116 = scmp.eq.s32.totalorder %s17, 7
      %p117 = por %p115, %p116
      %p118 = scmp.ne.s32.totalorder %s107, %s108
      %p119 = scmp.eq.s32.totalorder %s17, 0
      %p120 = por %p118, %p119
      %p121 = scmp.ne.s32.totalorder %s107, %s108
      %p122 = scmp.eq.s32.totalorder %s18, 7
      %p123 = por %p121, %p122
      %p125 = scmp.ne.s32.totalorder %s108, %s124
      %p126 = scmp.eq.s32.totalorder %s18, 0
      %p127 = por %p125, %p126
      %p128 = scmp.le.s32.totalorder 1, %s12
      %p129 = scmp.lt.s32.totalorder %s12, 9
      %p130 = pnand %p128, %p129
      %p131 = pneg %p130
      // Predicated region
      $region9: #{tpu_custom_call.1} parent=5 // pred_check
        _
      $region10: #{tpu_custom_call.1} parent=5 // pred_check_branch
        %133 = sbr.rel (%p130) target = $region12
      $region11: #{tpu_custom_call.1} parent=5 // pred_region
        %s134 = ssub.s32 %s12, 1
        // Predicated region
        $region13: #{tpu_custom_call.1} parent=11 // pred_check
          %p135 = pneg %p73
        $region14: #{tpu_custom_call.1} parent=11 // pred_check_branch
          %137 = sbr.rel (%p135) target = $region16
        $region15: #{tpu_custom_call.1} parent=11 // pred_region
          _
        $region16: #{tpu_custom_call.1} parent=11 // pred_fallthru
          _
        // Predicated region
        $region17: #{tpu_custom_call.1} parent=11 // pred_check
          %p138 = pneg %p94
        $region18: #{tpu_custom_call.1} parent=11 // pred_check_branch
          %140 = sbr.rel (%p138) target = $region20
        $region19: #{tpu_custom_call.1} parent=11 // pred_region
          _
        $region20: #{tpu_custom_call.1} parent=11 // pred_fallthru
          _
      $region12: #{tpu_custom_call.1} parent=5 // pred_fallthru
        _
      %p141 = scmp.lt.s32.totalorder %s12, 8
      // Predicated region
      $region21: #{tpu_custom_call.1} parent=5 // pred_check
        %p142 = pneg %p141
      $region22: #{tpu_custom_call.1} parent=5 // pred_check_branch
        %144 = sbr.rel (%p142) target = $region24
      $region23: #{tpu_custom_call.1} parent=5 // pred_region
        // Predicated region
        $region25: #{tpu_custom_call.1} parent=23 // pred_check
          %p145 = pneg %p46
        $region26: #{tpu_custom_call.1} parent=23 // pred_check_branch
          %147 = sbr.rel (%p145) target = $region28
        $region27: #{tpu_custom_call.1} parent=23 // pred_region
          %s148 = smul.u32 16, %s20
          %p149 = scmp.lt.s32.totalorder %s19, 3
          %s150 = scalar_select %p149, %s19, 3
          %p151 = scmp.lt.s32.totalorder %s148, 31
          %s152 = scalar_select %p151, %s148, 31
          %s153 = smul.addr %s150, 32
          %s154 = sadd.s32 %s152, %s153
          %s155 = smul.addr %s154, 4
          %s156 = scalar_lea.vmem %s0, %s155
          %s157 = smul.u32 16, %s20
        $region28: #{tpu_custom_call.1} parent=23 // pred_fallthru
          _
      $region24: #{tpu_custom_call.1} parent=5 // pred_fallthru
        _
      %p158 = scmp.le.s32.totalorder 1, %s12
      %p159 = scmp.lt.s32.totalorder %s12, 9
      %p160 = pnand %p158, %p159
      %p161 = pneg %p160
      // Predicated region
      $region29: #{tpu_custom_call.1} parent=5 // pred_check
        _
      $region30: #{tpu_custom_call.1} parent=5 // pred_check_branch
        %163 = sbr.rel (%p160) target = $region32
      $region31: #{tpu_custom_call.1} parent=5 // pred_region
        %s164 = ssub.s32 %s12, 1
        %s165 = smul.u32 16, %s22
        %p166 = scmp.lt.s32.totalorder %s21, 3
        %s167 = scalar_select %p166, %s21, 3
        %p168 = scmp.lt.s32.totalorder %s165, 31
        %s169 = scalar_select %p168, %s165, 31
        %s170 = smul.addr %s167, 32
        %s171 = sadd.s32 %s169, %s170
        %s172 = smul.addr %s171, 4
        %s173 = scalar_lea.vmem %s0, %s172
        %p174 = pneg %p52
        %p175 = pneg %p49
        %p176 = pneg %p73
        %p177 = pneg %p70
        %p178 = pneg %p94
        %p179 = pneg %p91
        %p180 = pneg %p120
        %p181 = pneg %p117
        %s182 = sand.u32 %s107, 1
        %s183 = scalar_lea.sflag [#allocation3], %s182
        %s184 = sand.u32 %s107, 1
        %s185 = scalar_lea.vmem [#allocation2], %s184
        %s186 = smul.u32 16, %s22
        %p187 = scmp.lt.s32.totalorder %s21, 3
        %s188 = scalar_select %p187, %s21, 3
        %p189 = scmp.lt.s32.totalorder %s186, 31
        %s190 = scalar_select %p189, %s186, 31
        %s191 = smul.addr %s188, 32
        %s192 = sadd.s32 %s190, %s191
        %s193 = smul.addr %s192, 4
        %s194 = scalar_lea.vmem %s0, %s193
        %s195 = smul.u32 16, %s22
        %v197 = vld [vmem:[%s194] sm:$0xf]
        %v198 = vld [vmem:[%s194 + $0x4] sm:$0xf]
        %v199 = vld [vmem:[%s194 + $0x8] sm:$0xf]
        %v200 = vld [vmem:[%s194 + $0xc] sm:$0xf]
        %v201 = vld [vmem:[%s194 + $0x10] sm:$0xf]
        %v202 = vld [vmem:[%s194 + $0x14] sm:$0xf]
        %v203 = vld [vmem:[%s194 + $0x18] sm:$0xf]
        %v204 = vld [vmem:[%s194 + $0x1c] sm:$0xf]
        %v205 = vld [vmem:[%s194 + $0x20] sm:$0xf]
        %v206 = vld [vmem:[%s194 + $0x24] sm:$0xf]
        %v207 = vld [vmem:[%s194 + $0x28] sm:$0xf]
        %v208 = vld [vmem:[%s194 + $0x2c] sm:$0xf]
        %v209 = vld [vmem:[%s194 + $0x30] sm:$0xf]
        %v210 = vld [vmem:[%s194 + $0x34] sm:$0xf]
        %v211 = vld [vmem:[%s194 + $0x38] sm:$0xf]
        %v212 = vld [vmem:[%s194 + $0x3c] sm:$0xf]
        %v213 = vld [vmem:[%s1] sm:$0x3]
        %v214 = vld [vmem:[%s2] sm:$0x1]
        %v216 = vlaneseq
        %v217 = vshrl.u32 %v216, 7
        %v218 = vsub.s32 0, %v217
        %v219 = vrot.slane %v214, %v218
        %v237 = vunpack.c.l.b16 %v197
        %v238 = vunpack.c.l.b16 %v198
        %v239 = vunpack.c.l.b16 %v199
        %v240 = vunpack.c.l.b16 %v200
        %v241 = vunpack.c.l.b16 %v201
        %v242 = vunpack.c.l.b16 %v202
        %v243 = vunpack.c.l.b16 %v203
        %v244 = vunpack.c.l.b16 %v204
        %v245 = vunpack.c.l.b16 %v205
        %v246 = vunpack.c.l.b16 %v206
        %v247 = vunpack.c.l.b16 %v207
        %v248 = vunpack.c.l.b16 %v208
        %v249 = vunpack.c.l.b16 %v209
        %v250 = vunpack.c.l.b16 %v210
        %v251 = vunpack.c.l.b16 %v211
        %v252 = vunpack.c.l.b16 %v212
        %v253 = vpack.c.b16 %v238, %v237
        %v254 = vpack.c.b16 %v240, %v239
        %v255 = vpack.c.b16 %v242, %v241
        %v256 = vpack.c.b16 %v244, %v243
        %v257 = vpack.c.b16 %v246, %v245
        %v258 = vpack.c.b16 %v248, %v247
        %v259 = vpack.c.b16 %v250, %v249
        %v260 = vpack.c.b16 %v252, %v251
        %vm261 = vcmask 23552
        %v263 = vsel %vm261, %v253, 0
        %v266 = vsel %vm261, %v254, 0
        %v269 = vsel %vm261, %v255, 0
        %v272 = vsel %vm261, %v256, 0
        %v275 = vsel %vm261, %v257, 0
        %v278 = vsel %vm261, %v258, 0
        %v281 = vsel %vm261, %v259, 0
        %v284 = vsel %vm261, %v260, 0
        %vm286 = vcmask 1040384
        %vm287 = vcmask 1041408
        %v288 = vsel %vm286, 4294967295, 65535
        %v289 = vsel %vm287, %v288, 0
        %v291 = vand.u32 %v213, %v289
        %293 = vmatprep.subr.bf16.mxu0 0
        %294 = vmatpush1.bf16.msra.mxu0 0
        %295 = vmatprep.subr.bf16.mxu0 0
        %296 = vmatpush1.bf16.msra.mxu0 0
        %297 = vmatprep.subr.bf16.mxu0 0
        %298 = vmatpush1.bf16.msra.mxu0 0
        %299 = vmatprep.subr.bf16.mxu0 0
        %300 = vmatpush1.bf16.msra.mxu0 0
        %301 = vmatprep.subr.bf16.mxu0 0
        %302 = vmatpush1.bf16.msra.mxu0 0
        %303 = vmatprep.subr.bf16.mxu0 0
        %304 = vmatpush1.bf16.msra.mxu0 0
        %305 = vmatprep.subr.bf16.mxu0 0
        %306 = vmatpush1.bf16.msra.mxu0 0
        %307 = vmatprep.subr.bf16.mxu0 0
        %308 = vmatpush1.bf16.msra.mxu0 %v291
        %309 = vmatprep.subr.bf16.mxu0 0
        %310 = vmatpush2.bf16.msra.mxu0 0
        %311 = vmatprep.subr.bf16.mxu0 0
        %312 = vmatpush2.bf16.msra.mxu0 0
        %313 = vmatprep.subr.bf16.mxu0 0
        %314 = vmatpush2.bf16.msra.mxu0 0
        %315 = vmatprep.subr.bf16.mxu0 0
        %316 = vmatpush2.bf16.msra.mxu0 0
        %317 = vmatprep.subr.bf16.mxu0 0
        %318 = vmatpush2.bf16.msra.mxu0 0
        %319 = vmatprep.subr.bf16.mxu0 0
        %320 = vmatpush2.bf16.msra.mxu0 0
        %321 = vmatprep.subr.bf16.mxu0 0
        %322 = vmatpush2.bf16.msra.mxu0 0
        %323 = vmatprep.subr.bf16.mxu0 0
        %324 = vmatpush2.bf16.msra.mxu0 0
        %325 = vmatprep.mubr.bf16.mxu0 0
        %326 = vmatmul.mubr.bf16.gmra.mxu0 %v263
        %v327 = vpop.f32.mrf.mxu0
        %v328 = vadd.f32 %v219, %v327
        %v329 = vpop.f32.mrf.mxu0
        %v330 = vpop.f32.mrf.mxu0
        %v331 = vadd.f32 %v219, %v330
        %v332 = vpop.f32.mrf.mxu0
        %333 = vmatprep.mubr.bf16.mxu0 0
        %334 = vmatmul.mubr.bf16.gmra.mxu0 %v266
        %v335 = vpop.f32.mrf.mxu0
        %v336 = vadd.f32 %v219, %v335
        %v337 = vpop.f32.mrf.mxu0
        %v338 = vpop.f32.mrf.mxu0
        %v339 = vadd.f32 %v219, %v338
        %v340 = vpop.f32.mrf.mxu0
        %341 = vmatprep.mubr.bf16.mxu0 0
        %342 = vmatmul.mubr.bf16.gmra.mxu0 %v269
        %v343 = vpop.f32.mrf.mxu0
        %v344 = vadd.f32 %v219, %v343
        %v345 = vpop.f32.mrf.mxu0
        %v346 = vpop.f32.mrf.mxu0
        %v347 = vadd.f32 %v219, %v346
        %v348 = vpop.f32.mrf.mxu0
        %349 = vmatprep.mubr.bf16.mxu0 0
        %350 = vmatmul.mubr.bf16.gmra.mxu0 %v272
        %v351 = vpop.f32.mrf.mxu0
        %v352 = vadd.f32 %v219, %v351
        %v353 = vpop.f32.mrf.mxu0
        %v354 = vpop.f32.mrf.mxu0
        %v355 = vadd.f32 %v219, %v354
        %v356 = vpop.f32.mrf.mxu0
        %357 = vmatprep.mubr.bf16.mxu0 0
        %358 = vmatmul.mubr.bf16.gmra.mxu0 %v275
        %v359 = vpop.f32.mrf.mxu0
        %v360 = vadd.f32 %v219, %v359
        %v361 = vpop.f32.mrf.mxu0
        %v362 = vpop.f32.mrf.mxu0
        %v363 = vadd.f32 %v219, %v362
        %v364 = vpop.f32.mrf.mxu0
        %365 = vmatprep.mubr.bf16.mxu0 0
        %366 = vmatmul.mubr.bf16.gmra.mxu0 %v278
        %v367 = vpop.f32.mrf.mxu0
        %v368 = vadd.f32 %v219, %v367
        %v369 = vpop.f32.mrf.mxu0
        %v370 = vpop.f32.mrf.mxu0
        %v371 = vadd.f32 %v219, %v370
        %v372 = vpop.f32.mrf.mxu0
        %373 = vmatprep.mubr.bf16.mxu0 0
        %374 = vmatmul.mubr.bf16.gmra.mxu0 %v281
        %v375 = vpop.f32.mrf.mxu0
        %v376 = vadd.f32 %v219, %v375
        %v377 = vpop.f32.mrf.mxu0
        %v378 = vpop.f32.mrf.mxu0
        %v379 = vadd.f32 %v219, %v378
        %v380 = vpop.f32.mrf.mxu0
        %381 = vmatprep.mubr.bf16.mxu0 0
        %382 = vmatmul.mubr.bf16.gmra.mxu0 %v284
        %v383 = vpop.f32.mrf.mxu0
        %v384 = vadd.f32 %v219, %v383
        %v385 = vpop.f32.mrf.mxu0
        %v386 = vpop.f32.mrf.mxu0
        %v387 = vadd.f32 %v219, %v386
        %v388 = vpop.f32.mrf.mxu0
        %389 = vdwg.mxu0
        %v390 = vmax.f32 %v328, 0.0
        %v391 = vmax.f32 %v331, 0.0
        %v392 = vmax.f32 %v336, 0.0
        %v393 = vmax.f32 %v339, 0.0
        %v394 = vmax.f32 %v344, 0.0
        %v395 = vmax.f32 %v347, 0.0
        %v396 = vmax.f32 %v352, 0.0
        %v397 = vmax.f32 %v355, 0.0
        %v398 = vmax.f32 %v360, 0.0
        %v399 = vmax.f32 %v363, 0.0
        %v400 = vmax.f32 %v368, 0.0
        %v401 = vmax.f32 %v371, 0.0
        %v402 = vmax.f32 %v376, 0.0
        %v403 = vmax.f32 %v379, 0.0
        %v404 = vmax.f32 %v384, 0.0
        %v405 = vmax.f32 %v387, 0.0
        %vm406 = vcmask 523264
        %v407 = vsel %vm406, %v390, -inf
        %v408 = vsel %vm406, %v391, -inf
        %v409 = vsel %vm406, %v392, -inf
        %v410 = vsel %vm406, %v393, -inf
        %v411 = vsel %vm406, %v394, -inf
        %v412 = vmax.f32 %v407, %v411
        %v413 = vsel %vm406, %v395, -inf
        %v414 = vmax.f32 %v408, %v413
        %v415 = vsel %vm406, %v396, -inf
        %v416 = vmax.f32 %v409, %v415
        %v417 = vsel %vm406, %v397, -inf
        %v418 = vmax.f32 %v410, %v417
        %v419 = vsel %vm406, %v398, -inf
        %v420 = vmax.f32 %v412, %v419
        %v421 = vsel %vm406, %v399, -inf
        %v422 = vmax.f32 %v414, %v421
        %v423 = vsel %vm406, %v400, -inf
        %v424 = vmax.f32 %v416, %v423
        %v425 = vsel %vm406, %v401, -inf
        %v426 = vmax.f32 %v418, %v425
        %v427 = vsel %vm406, %v402, -inf
        %v428 = vmax.f32 %v420, %v427
        %v429 = vsel %vm406, %v403, -inf
        %v430 = vmax.f32 %v422, %v429
        %v431 = vsel %vm406, %v404, -inf
        %v432 = vmax.f32 %v424, %v431
        %v433 = vsel %vm406, %v405, -inf
        %v434 = vmax.f32 %v426, %v433
        %v435 = vmax.f32 %v428, %v430
        %v436 = vmax.f32 %v432, %v434
        %v437 = vmax.f32 %v435, %v436
        %v438 = vrot.slane %v437, 4
        %v439 = vmax.f32 %v437, %v438
        %v440 = vrot.slane %v439, 2
        %v441 = vmax.f32 %v439, %v440
        %v442 = vrot.slane %v441, 1
        %v443 = vmax.f32 %v441, %v442
        %p444 = scmp.eq.s32.totalorder %s22, 0
        // Predicated region
        $region33: #{tpu_custom_call.1} parent=31 // pred_check
          %p445 = pneg %p444
        $region34: #{tpu_custom_call.1} parent=31 // pred_check_branch
          %447 = sbr.rel (%p445) target = $region36
        $region35: #{tpu_custom_call.1} parent=31 // pred_region
          %vm448 = vcmask 516096
          %449 = vst.msk [vmem:[%s185] sm:$0x1] %vm448, %v443
        $region36: #{tpu_custom_call.1} parent=31 // pred_fallthru
          _
        %p450 = scmp.gt.s32.totalorder %s22, 0
        // Predicated region
        $region37: #{tpu_custom_call.1} parent=31 // pred_check
          %p451 = pneg %p450
        $region38: #{tpu_custom_call.1} parent=31 // pred_check_branch
          %453 = sbr.rel (%p451) target = $region40
        $region39: #{tpu_custom_call.1} parent=31 // pred_region
          %v454 = vld [vmem:[%s185] sm:$0x1]
          %v455 = vmax.f32 %v454, %v443
          %vm456 = vcmask 516096
          %457 = vst.msk [vmem:[%s185] sm:$0x1] %vm456, %v455
        $region40: #{tpu_custom_call.1} parent=31 // pred_fallthru
          _
        %s458 = sand.u32 %s107, 1
        %s459 = scalar_lea.sflag [#allocation3], %s458
        %s460 = sand.u32 %s107, 1
        %s461 = scalar_lea.vmem [#allocation2], %s460
        // Predicated region
        $region41: #{tpu_custom_call.1} parent=31 // pred_check
          %p462 = pneg %p117
        $region42: #{tpu_custom_call.1} parent=31 // pred_check_branch
          %464 = sbr.rel (%p462) target = $region44
        $region43: #{tpu_custom_call.1} parent=31 // pred_region
          %s466 = ssub.s32 16, 16
          %467 = vsyncadd %s459, %s466
          %s468 = smul.addr %s21, 16
          %s469 = scalar_lea.hbm %s3, %s468
          %s471 = sshll.u32 %s461, 4
          %s472 = int_to_ptr.vmem [resolvable:$true] %s471
          %474 = dma.vmem_to_hbm [thread:$0]  %s472, 16, %s469, %s459
        $region44: #{tpu_custom_call.1} parent=31 // pred_fallthru
          _
      $region32: #{tpu_custom_call.1} parent=5 // pred_fallthru
        _
      %p475 = scmp.le.s32.totalorder 2, %s12
      // Predicated region
      $region45: #{tpu_custom_call.1} parent=5 // pred_check
        %p476 = pneg %p475
      $region46: #{tpu_custom_call.1} parent=5 // pred_check_branch
        %478 = sbr.rel (%p476) target = $region48
      $region47: #{tpu_custom_call.1} parent=5 // pred_region
        %s479 = ssub.s32 %s12, 2
        // Predicated region
        $region49: #{tpu_custom_call.1} parent=47 // pred_check
          %p480 = pneg %p123
        $region50: #{tpu_custom_call.1} parent=47 // pred_check_branch
          %482 = sbr.rel (%p480) target = $region52
        $region51: #{tpu_custom_call.1} parent=47 // pred_region
          %s483 = sand.u32 %s108, 1
          %s484 = scalar_lea.sflag [#allocation3], %s483
          %s485 = sand.u32 %s108, 1
          %s486 = scalar_lea.vmem [#allocation2], %s485
          %487 = dma.done %s484, 16
        $region52: #{tpu_custom_call.1} parent=47 // pred_fallthru
          _
      $region48: #{tpu_custom_call.1} parent=5 // pred_fallthru
        _
    $region6: #{tpu_custom_call.1} parent=1 // loop_footer
      %s16 = sadd.s32 1, %s12
    $region7: #{tpu_custom_call.1} parent=1 // loop_footer_branch
      %11 = sbr.rel target = $region3
    $region8: #{tpu_custom_call.1} parent=1 // loop_exit
      _
    %488 = vsyncpa [#allocation3], 1
    %s489 = scalar_lea.sflag [#allocation3], 1
    %490 = vsyncpa %s489, 1

</llo_original>
